<compile_context>
chip_gen: v5e
topology: v5e:2x2
jax: 0.10.0
libtpu: 0.0.40
codegen_flags: <defaults>
</compile_context>

<pallas_src>
import functools
import numpy as np

import jax
import jax.numpy as jnp
from jax.experimental import pallas as pl
from jax.experimental.pallas import tpu as pltpu


# Architecture constants of the chosen Sequential.
_KH = _KW = 3
_PAD1 = 0          # padding of conv layer 1 (both spatial dims)
_PAD2 = 1          # padding of conv layer 2 (both spatial dims)


def _pick_batch_tile(B, max_bt=8):
    """Largest divisor of B that is <= max_bt while keeping >= 2 grid steps when B >= 2
    (so both TensorCores on v7x get work through the parallel grid axis)."""
    cap = min(max_bt, B if B < 2 else max(1, B // 2))
    for bt in range(cap, 0, -1):
        if B % bt == 0:
            return bt
    return 1


def _fused_conv_kernel(x_ref, m1_ref, m2_ref, w1_ref, b1_ref, w2_ref, b2_ref, o_ref,
                       *, NB, W, shift):
    """Conv(3x3,p=0)+ReLU+mask -> Conv(3x3,p=1)+ReLU+mask for Bt lane-folded images."""
    f32 = jnp.float32
    offs = [kh * W + kw for kh in range(_KH) for kw in range(_KW)]

    # ---------- layer 1: Conv2d(cin->c1, 3x3, stride 1, pad 0) + bias + ReLU + mask ----
    xf = x_ref[0]                                       # (cin, Wblk) f32, stride-256/image
    lhs1 = jnp.concatenate([xf[:, o:o + NB] for o in offs], axis=0)      # (9*cin, NB)
    y1 = jnp.dot(w1_ref[...], lhs1.astype(jnp.bfloat16),
                 preferred_element_type=f32) + b1_ref[...]
    # mask1 zeroes: columns w >= len1, the row-wrap garbage columns w >= W1, and the
    # per-image tail positions m >= 224 (all precomputed in the wrapper).
    y1 = jnp.maximum(y1, 0.0) * m1_ref[0]               # (c1, NB) f32

    # ---------- layer 2: Conv2d(c1->c2, 3x3, stride 1, pad 1) + bias + ReLU + mask -----
    # pad=1 on the stride-W flat image == shift y1 by (W+1) with zero margins; the
    # masked columns of y1 already provide the in-row zero padding.
    zpad = jnp.zeros((y1.shape[0], shift), f32)
    ypad = jnp.concatenate([zpad, y1, zpad], axis=1)                     # (c1, NB+2*shift)
    lhs2 = jnp.concatenate([ypad[:, o:o + NB] for o in offs], axis=0)    # (9*c1, NB)
    y2 = jnp.dot(w2_ref[...], lhs2.astype(jnp.bfloat16),
                 preferred_element_type=f32) + b2_ref[...]
    y2 = jnp.maximum(y2, 0.0) * m2_ref[0]
    o_ref[0] = y2.astype(o_ref.dtype)                   # lane-dense (c2, Bt*256) store


def _new_length(length, kernel_w, stride_w, pad_w, dil_w=1):
    # Mirrors MaskedConvolution._compute_new_length for nn.Conv2d (stride 1 -> exact).
    return (length + 2 * pad_w - dil_w * (kernel_w - 1) - 1) // stride_w + 1


def _keep_mask(lens, w_out, w_row, m_valid, stride):
    """(B, stride) float keep-mask for one layer.

    Matches PyTorch `x[i, :, :, length:] = 0` (including negative lengths via Python
    negative indexing, and no-op when length >= width), and additionally zeroes the
    flat-layout garbage columns (w >= w_out, m >= m_valid) that the fused layer-2 conv
    relies on being zero."""
    thr = jnp.where(lens >= 0, lens, w_out + lens)
    thr = jnp.clip(thr, 0, w_out)                                   # (B,)
    p = jnp.arange(stride, dtype=jnp.int32)                         # (stride,)
    w = p % w_row
    keep = (p < m_valid)[None, :] & (w[None, :] < thr[:, None])     # (B, stride)
    return keep.astype(jnp.float32)


@jax.jit
def masked_convolution_forward(x_nchw, seq_lengths, w1_oihw, b1, w2_oihw, b2):
    """Returns (output NCHW, updated seq_lengths), matching the PyTorch forward."""
    B, cin, H, W = x_nchw.shape
    c1, c2 = w1_oihw.shape[0], w2_oihw.shape[0]
    H1, W1 = H + 2 * _PAD1 - (_KH - 1), W + 2 * _PAD1 - (_KW - 1)
    Hp2, Wp2 = H1 + 2 * _PAD2, W1 + 2 * _PAD2
    H2, W2 = Hp2 - (_KH - 1), Wp2 - (_KW - 1)
    S = H * W                          # per-image lane stride inside a block (256)
    M1, M2 = H1 * W, H2 * Wp2          # valid flat positions per image (224, 224)
    assert _PAD1 == 0 and Wp2 == W, "fusion requires pad1=0 and W1 + 2*pad2 == W"

    Bt = _pick_batch_tile(B)           # images per grid step (>= 8 when B allows)
    nblk = B // Bt
    NB = Bt * S
    Wblk = NB + 128                    # room for the 3x3 tap overhang of the last image

    # Sequence lengths after each Conv2d (ReLU leaves them unchanged).
    l0 = seq_lengths.astype(jnp.int32)
    l1 = _new_length(l0, _KW, 1, _PAD1)
    l2 = _new_length(l1, _KW, 1, _PAD2)

    # Per-column keep masks, precomputed once outside the kernel.
    m1 = _keep_mask(l1, W1, W, M1, S).reshape(nblk, 1, NB)
    m2 = _keep_mask(l2, W2, Wp2, M2, S).reshape(nblk, 1, NB)

    # Block layout: (nblk, cin, Bt*S + 128) with image b_local at lanes [b_local*S, ...).
    x_blk = (x_nchw.astype(jnp.float32)
             .reshape(nblk, Bt, cin, S)
             .transpose(0, 2, 1, 3)
             .reshape(nblk, cin, NB))
    x_blk = jnp.pad(x_blk, ((0, 0), (0, 0), (0, Wblk - NB)))

    # Weights in matmul layout (contraction row = (kh*KW + kw)*Cin + ci), bf16 operands.
    w1_mat = jnp.transpose(w1_oihw, (0, 2, 3, 1)).reshape(c1, _KH * _KW * cin).astype(jnp.bfloat16)
    w2_mat = jnp.transpose(w2_oihw, (0, 2, 3, 1)).reshape(c2, _KH * _KW * c1).astype(jnp.bfloat16)
    b1c = b1.reshape(c1, 1).astype(jnp.float32)
    b2c = b2.reshape(c2, 1).astype(jnp.float32)

    kernel = functools.partial(_fused_conv_kernel, NB=NB, W=W, shift=_PAD2 * Wp2 + _PAD2)
    grid_spec = pltpu.PrefetchScalarGridSpec(
        num_scalar_prefetch=0,
        grid=(nblk,),
        in_specs=[
            pl.BlockSpec((1, cin, Wblk), lambda g: (g, 0, 0)),
            pl.BlockSpec((1, 1, NB), lambda g: (g, 0, 0)),
            pl.BlockSpec((1, 1, NB), lambda g: (g, 0, 0)),
            pl.BlockSpec((c1, _KH * _KW * cin), lambda g: (0, 0)),
            pl.BlockSpec((c1, 1), lambda g: (0, 0)),
            pl.BlockSpec((c2, _KH * _KW * c1), lambda g: (0, 0)),
            pl.BlockSpec((c2, 1), lambda g: (0, 0)),
        ],
        out_specs=pl.BlockSpec((1, c2, NB), lambda g: (g, 0, 0)),
    )
    y = pl.pallas_call(
        kernel,
        out_shape=jax.ShapeDtypeStruct((nblk, c2, NB), jnp.float32),
        grid_spec=grid_spec,
        compiler_params=pltpu.CompilerParams(dimension_semantics=("parallel",)),
    )(x_blk, m1, m2, w1_mat, b1c, w2_mat, b2c)

    # Un-fold batch from lanes, drop the per-image tail and the 2 stride-pad columns.
    out = (y.reshape(nblk, c2, Bt, S)
             .transpose(0, 2, 1, 3)
             .reshape(B, c2, S))[:, :, :M2].reshape(B, c2, H2, Wp2)[:, :, :, :W2]
    return out, l2


# ---------------------------------------------------------------------------
# Pure-numpy reference mirroring the PyTorch forward loop exactly.
# ---------------------------------------------------------------------------
def _reference_forward(x, seq_lengths, w1, b1, w2, b2):
    def conv2d(x, w, b, pad):
        Bn, Cin, H, W = x.shape
        Cout, _, KH, KW = w.shape
        xp = np.pad(x, ((0, 0), (0, 0), (pad, pad), (pad, pad)))
        Ho, Wo = H + 2 * pad - KH + 1, W + 2 * pad - KW + 1
        y = np.zeros((Bn, Cout, Ho, Wo))
        for kh in range(KH):
            for kw in range(KW):
                patch = xp[:, :, kh:kh + Ho, kw:kw + Wo]         # (B, Cin, Ho, Wo)
                y += np.einsum('bchw,dc->bdhw', patch, w[:, :, kh, kw])
        return y + b[None, :, None, None]

    x = np.asarray(x, np.float64)
    lens = np.asarray(seq_lengths, np.int64)
    for (w, b, pad) in ((np.asarray(w1, np.float64), np.asarray(b1, np.float64), _PAD1),
                        (np.asarray(w2, np.float64), np.asarray(b2, np.float64), _PAD2)):
        y = conv2d(x, w, b, pad)
        # Conv2d module: update lengths, then mask along the last axis.
        lens = (lens + 2 * pad - (w.shape[3] - 1) - 1) // 1 + 1
        for i in range(y.shape[0]):
            if y.shape[3] - lens[i] > 0:
                y[i, :, :, lens[i]:] = 0.0
        # ReLU module: lengths unchanged, apply, mask again.
        y = np.maximum(y, 0.0)
        for i in range(y.shape[0]):
            if y.shape[3] - lens[i] > 0:
                y[i, :, :, lens[i]:] = 0.0
        x = y
    return x, lens


if __name__ == "__main__":
    key = jax.random.PRNGKey(0)
    k_x, k_w1, k_b1, k_w2, k_b2, k_x2 = jax.random.split(key, 6)

    Cin, C1, C2, H, W = 4, 8, 16, 16, 16
    # Parameters in the PyTorch Conv2d layout (Cout, Cin, KH, KW).
    w1 = 0.1 * jax.random.normal(k_w1, (C1, Cin, 3, 3), jnp.float32)
    b1 = 0.1 * jax.random.normal(k_b1, (C1,), jnp.float32)
    w2 = 0.1 * jax.random.normal(k_w2, (C2, C1, 3, 3), jnp.float32)
    b2 = 0.1 * jax.random.normal(k_b2, (C2,), jnp.float32)

    def check(x, lens):
        out, out_lens = masked_convolution_forward(x, lens, w1, b1, w2, b2)
        out = np.asarray(jax.block_until_ready(out))
        out_lens = np.asarray(jax.block_until_ready(out_lens))
        ref, ref_lens = _reference_forward(np.asarray(x), np.asarray(lens),
                                           np.asarray(w1), np.asarray(b1),
                                           np.asarray(w2), np.asarray(b2))
        assert out.shape == ref.shape, (out.shape, ref.shape)
        # bf16 MXU operands (f32 accumulation) -> tolerance loosened per review.
        np.testing.assert_allclose(out, ref, rtol=3e-2, atol=3e-2)
        np.testing.assert_array_equal(out_lens, ref_lens)

    # Case 1: the module's nominal small shape (B=2) -> Bt=1, grid=(2,).
    x_a = jax.random.normal(k_x, (2, Cin, H, W), jnp.float32)
    check(x_a, jnp.array([16, 11], dtype=jnp.int32))

    # Case 2: larger batch exercising the lane-folded batched path (Bt=8, grid=(2,)),
    # including short lengths (2 -> fully masked row) to verify mask semantics.
    x_b = jax.random.normal(k_x2, (16, Cin, H, W), jnp.float32)
    lens_b = jnp.array([16, 11, 8, 3, 2, 16, 14, 13, 7, 5, 4, 15, 12, 10, 9, 6],
                       dtype=jnp.int32)
    check(x_b, lens_b)

    print("KERNEL_OK")
</pallas_src>

<mosaic_0001>
module attributes {stable_mosaic.version = 11 : i64} {
  func.func @_fused_conv_kernel(%arg0: i32, %arg1: memref<1x4x384xf32, #tpu.memory_space<vmem>>, %arg2: memref<1x1x256xf32, #tpu.memory_space<vmem>>, %arg3: memref<1x1x256xf32, #tpu.memory_space<vmem>>, %arg4: memref<8x36xbf16, #tpu.memory_space<vmem>>, %arg5: memref<8x1xf32, #tpu.memory_space<vmem>>, %arg6: memref<16x72xbf16, #tpu.memory_space<vmem>>, %arg7: memref<16x1xf32, #tpu.memory_space<vmem>>, %arg8: memref<1x16x256xf32, #tpu.memory_space<vmem>>) attributes {dimension_semantics = [#tpu.dimension_semantics<parallel>], iteration_bounds = array<i64: 2>, scalar_prefetch = 0 : i64, scratch_operands = 0 : i64, tpu.core_type = #tpu.core_type<tc>, window_params = [{transform_indices = @transform_0, window_bounds = array<i64: 1, 4, 384>}, {transform_indices = @transform_1, window_bounds = array<i64: 1, 1, 256>}, {transform_indices = @transform_2, window_bounds = array<i64: 1, 1, 256>}, {pipeline_mode = #tpu.pipeline_mode<synchronous>, transform_indices = @transform_3, window_bounds = array<i64: 8, 36>}, {pipeline_mode = #tpu.pipeline_mode<synchronous>, transform_indices = @transform_4, window_bounds = array<i64: 8, 1>}, {pipeline_mode = #tpu.pipeline_mode<synchronous>, transform_indices = @transform_5, window_bounds = array<i64: 16, 72>}, {pipeline_mode = #tpu.pipeline_mode<synchronous>, transform_indices = @transform_6, window_bounds = array<i64: 16, 1>}, {transform_indices = @transform_7, window_bounds = array<i64: 1, 16, 256>}]} {
    %c0 = arith.constant 0 : index
    %c0_0 = arith.constant 0 : index
    %c0_1 = arith.constant 0 : index
    %0 = vector.load %arg1[%c0, %c0_0, %c0_1] : memref<1x4x384xf32, #tpu.memory_space<vmem>>, vector<1x4x384xf32>
    %1 = vector.shape_cast %0 : vector<1x4x384xf32> to vector<4x384xf32>
    %2 = vector.extract_strided_slice %1 {offsets = [0, 0], sizes = [4, 256], strides = [1, 1]} : vector<4x384xf32> to vector<4x256xf32>
    %3 = vector.extract_strided_slice %1 {offsets = [0, 1], sizes = [4, 256], strides = [1, 1]} : vector<4x384xf32> to vector<4x256xf32>
    %4 = vector.extract_strided_slice %1 {offsets = [0, 2], sizes = [4, 256], strides = [1, 1]} : vector<4x384xf32> to vector<4x256xf32>
    %5 = vector.extract_strided_slice %1 {offsets = [0, 16], sizes = [4, 256], strides = [1, 1]} : vector<4x384xf32> to vector<4x256xf32>
    %6 = vector.extract_strided_slice %1 {offsets = [0, 17], sizes = [4, 256], strides = [1, 1]} : vector<4x384xf32> to vector<4x256xf32>
    %7 = vector.extract_strided_slice %1 {offsets = [0, 18], sizes = [4, 256], strides = [1, 1]} : vector<4x384xf32> to vector<4x256xf32>
    %8 = vector.extract_strided_slice %1 {offsets = [0, 32], sizes = [4, 256], strides = [1, 1]} : vector<4x384xf32> to vector<4x256xf32>
    %9 = vector.extract_strided_slice %1 {offsets = [0, 33], sizes = [4, 256], strides = [1, 1]} : vector<4x384xf32> to vector<4x256xf32>
    %10 = vector.extract_strided_slice %1 {offsets = [0, 34], sizes = [4, 256], strides = [1, 1]} : vector<4x384xf32> to vector<4x256xf32>
    %11 = tpu.concatenate %2, %3, %4, %5, %6, %7, %8, %9, %10 in 0 : vector<4x256xf32>, vector<4x256xf32>, vector<4x256xf32>, vector<4x256xf32>, vector<4x256xf32>, vector<4x256xf32>, vector<4x256xf32>, vector<4x256xf32>, vector<4x256xf32> -> vector<36x256xf32>
    %c0_2 = arith.constant 0 : index
    %c0_3 = arith.constant 0 : index
    %12 = vector.load %arg4[%c0_2, %c0_3] : memref<8x36xbf16, #tpu.memory_space<vmem>>, vector<8x36xbf16>
    %13 = arith.truncf %11 : vector<36x256xf32> to vector<36x256xbf16>
    %cst = arith.constant dense<0.000000e+00> : vector<8x256xf32>
    %14 = tpu.matmul %12, %13, %cst {dimension_numbers = #tpu.dot_dimension_numbers<[1], [0], [0], [1], [0, 0, 1, 1], [], []>} : vector<8x36xbf16>, vector<36x256xbf16>, vector<8x256xf32> -> vector<8x256xf32>
    %c0_4 = arith.constant 0 : index
    %c0_5 = arith.constant 0 : index
    %15 = vector.load %arg5[%c0_4, %c0_5] : memref<8x1xf32, #tpu.memory_space<vmem>>, vector<8x1xf32>
    %16 = vector.broadcast %15 : vector<8x1xf32> to vector<8x256xf32>
    %17 = arith.addf %14, %16 : vector<8x256xf32>
    %cst_6 = arith.constant 0.000000e+00 : f32
    %18 = vector.broadcast %cst_6 : f32 to vector<8x256xf32>
    %19 = arith.maximumf %17, %18 : vector<8x256xf32>
    %c0_7 = arith.constant 0 : index
    %c0_8 = arith.constant 0 : index
    %c0_9 = arith.constant 0 : index
    %20 = vector.load %arg2[%c0_7, %c0_8, %c0_9] : memref<1x1x256xf32, #tpu.memory_space<vmem>>, vector<1x1x256xf32>
    %21 = vector.shape_cast %20 : vector<1x1x256xf32> to vector<1x256xf32>
    %22 = vector.broadcast %21 : vector<1x256xf32> to vector<8x256xf32>
    %23 = arith.mulf %19, %22 : vector<8x256xf32>
    %cst_10 = arith.constant 0.000000e+00 : f32
    %24 = vector.broadcast %cst_10 : f32 to vector<8x17xf32>
    %25 = tpu.concatenate %24, %23, %24 in 1 : vector<8x17xf32>, vector<8x256xf32>, vector<8x17xf32> -> vector<8x290xf32>
    %26 = vector.extract_strided_slice %25 {offsets = [0, 0], sizes = [8, 256], strides = [1, 1]} : vector<8x290xf32> to vector<8x256xf32>
    %27 = vector.extract_strided_slice %25 {offsets = [0, 1], sizes = [8, 256], strides = [1, 1]} : vector<8x290xf32> to vector<8x256xf32>
    %28 = vector.extract_strided_slice %25 {offsets = [0, 2], sizes = [8, 256], strides = [1, 1]} : vector<8x290xf32> to vector<8x256xf32>
    %29 = vector.extract_strided_slice %25 {offsets = [0, 16], sizes = [8, 256], strides = [1, 1]} : vector<8x290xf32> to vector<8x256xf32>
    %30 = vector.extract_strided_slice %25 {offsets = [0, 17], sizes = [8, 256], strides = [1, 1]} : vector<8x290xf32> to vector<8x256xf32>
    %31 = vector.extract_strided_slice %25 {offsets = [0, 18], sizes = [8, 256], strides = [1, 1]} : vector<8x290xf32> to vector<8x256xf32>
    %32 = vector.extract_strided_slice %25 {offsets = [0, 32], sizes = [8, 256], strides = [1, 1]} : vector<8x290xf32> to vector<8x256xf32>
    %33 = vector.extract_strided_slice %25 {offsets = [0, 33], sizes = [8, 256], strides = [1, 1]} : vector<8x290xf32> to vector<8x256xf32>
    %34 = vector.extract_strided_slice %25 {offsets = [0, 34], sizes = [8, 256], strides = [1, 1]} : vector<8x290xf32> to vector<8x256xf32>
    %35 = tpu.concatenate %26, %27, %28, %29, %30, %31, %32, %33, %34 in 0 : vector<8x256xf32>, vector<8x256xf32>, vector<8x256xf32>, vector<8x256xf32>, vector<8x256xf32>, vector<8x256xf32>, vector<8x256xf32>, vector<8x256xf32>, vector<8x256xf32> -> vector<72x256xf32>
    %c0_11 = arith.constant 0 : index
    %c0_12 = arith.constant 0 : index
    %36 = vector.load %arg6[%c0_11, %c0_12] : memref<16x72xbf16, #tpu.memory_space<vmem>>, vector<16x72xbf16>
    %37 = arith.truncf %35 : vector<72x256xf32> to vector<72x256xbf16>
    %cst_13 = arith.constant dense<0.000000e+00> : vector<16x256xf32>
    %38 = tpu.matmul %36, %37, %cst_13 {dimension_numbers = #tpu.dot_dimension_numbers<[1], [0], [0], [1], [0, 0, 1, 1], [], []>} : vector<16x72xbf16>, vector<72x256xbf16>, vector<16x256xf32> -> vector<16x256xf32>
    %c0_14 = arith.constant 0 : index
    %c0_15 = arith.constant 0 : index
    %39 = vector.load %arg7[%c0_14, %c0_15] : memref<16x1xf32, #tpu.memory_space<vmem>>, vector<16x1xf32>
    %40 = vector.broadcast %39 : vector<16x1xf32> to vector<16x256xf32>
    %41 = arith.addf %38, %40 : vector<16x256xf32>
    %cst_16 = arith.constant 0.000000e+00 : f32
    %42 = vector.broadcast %cst_16 : f32 to vector<16x256xf32>
    %43 = arith.maximumf %41, %42 : vector<16x256xf32>
    %c0_17 = arith.constant 0 : index
    %c0_18 = arith.constant 0 : index
    %c0_19 = arith.constant 0 : index
    %44 = vector.load %arg3[%c0_17, %c0_18, %c0_19] : memref<1x1x256xf32, #tpu.memory_space<vmem>>, vector<1x1x256xf32>
    %45 = vector.shape_cast %44 : vector<1x1x256xf32> to vector<1x256xf32>
    %46 = vector.broadcast %45 : vector<1x256xf32> to vector<16x256xf32>
    %47 = arith.mulf %43, %46 : vector<16x256xf32>
    %c0_20 = arith.constant 0 : index
    %c0_21 = arith.constant 0 : index
    %c0_22 = arith.constant 0 : index
    %48 = vector.load %arg8[%c0_20, %c0_21, %c0_22] : memref<1x16x256xf32, #tpu.memory_space<vmem>>, vector<1x16x256xf32>
    %49 = vector.shape_cast %48 : vector<1x16x256xf32> to vector<16x256xf32>
    %50 = vector.shape_cast %47 : vector<16x256xf32> to vector<1x16x256xf32>
    tpu.vector_store %arg8[%c0_20, %c0_21, %c0_22], %50 {strides = array<i32>} : memref<1x16x256xf32, #tpu.memory_space<vmem>>, vector<1x16x256xf32>,
    return
  }
  func.func @transform_0(%arg0: i32) -> (i32, i32, i32) {
    %c0_i32 = arith.constant 0 : i32
    %c0_i32_0 = arith.constant 0 : i32
    %c0_i32_1 = arith.constant 0 : i32
    return %arg0, %c0_i32, %c0_i32_0 : i32, i32, i32
  }
  func.func @transform_1(%arg0: i32) -> (i32, i32, i32) {
    %c0_i32 = arith.constant 0 : i32
    %c0_i32_0 = arith.constant 0 : i32
    %c0_i32_1 = arith.constant 0 : i32
    return %arg0, %c0_i32, %c0_i32_0 : i32, i32, i32
  }
  func.func @transform_2(%arg0: i32) -> (i32, i32, i32) {
    %c0_i32 = arith.constant 0 : i32
    %c0_i32_0 = arith.constant 0 : i32
    %c0_i32_1 = arith.constant 0 : i32
    return %arg0, %c0_i32, %c0_i32_0 : i32, i32, i32
  }
  func.func @transform_3(%arg0: i32) -> (i32, i32) {
    %c0_i32 = arith.constant 0 : i32
    %c0_i32_0 = arith.constant 0 : i32
    %c0_i32_1 = arith.constant 0 : i32
    return %c0_i32, %c0_i32_0 : i32, i32
  }
  func.func @transform_4(%arg0: i32) -> (i32, i32) {
    %c0_i32 = arith.constant 0 : i32
    %c0_i32_0 = arith.constant 0 : i32
    %c0_i32_1 = arith.constant 0 : i32
    return %c0_i32, %c0_i32_0 : i32, i32
  }
  func.func @transform_5(%arg0: i32) -> (i32, i32) {
    %c0_i32 = arith.constant 0 : i32
    %c0_i32_0 = arith.constant 0 : i32
    %c0_i32_1 = arith.constant 0 : i32
    return %c0_i32, %c0_i32_0 : i32, i32
  }
  func.func @transform_6(%arg0: i32) -> (i32, i32) {
    %c0_i32 = arith.constant 0 : i32
    %c0_i32_0 = arith.constant 0 : i32
    %c0_i32_1 = arith.constant 0 : i32
    return %c0_i32, %c0_i32_0 : i32, i32
  }
  func.func @transform_7(%arg0: i32) -> (i32, i32, i32) {
    %c0_i32 = arith.constant 0 : i32
    %c0_i32_0 = arith.constant 0 : i32
    %c0_i32_1 = arith.constant 0 : i32
    return %arg0, %c0_i32, %c0_i32_0 : i32, i32, i32
  }
}

</mosaic_0001>

<llo_original>
// kernel: masked_convolution_forward.1
$region0: #{masked_convolution_forward.1}
  #allocation0 [shape = 'u32[]', space=smem, size = 0x4, offset = 0x4, fixed_abs, tag = 'smem constant byte address 0x4 - core index']
  #allocation1 [shape = 'u32[72,128]{1,0:T(1,128)}', space=vmem, size = 0x9000, scoped, tag = 'internal scratch']
  %s0 = inlined_call_operand.vmem [shape: f32[2,4,384], index: 0, kind: input, shape index: {}]
  %s1 = inlined_call_operand.vmem [shape: f32[2,1,256], index: 1, kind: input, shape index: {}, may-alias: {1,2}]
  %s2 = inlined_call_operand.vmem [shape: f32[2,1,256], index: 2, kind: input, shape index: {}, may-alias: {1,2}]
  %s3 = inlined_call_operand.vmem [shape: bf16[8,36], index: 3, kind: input, shape index: {}]
  %s4 = inlined_call_operand.vmem [shape: f32[8,1], index: 4, kind: input, shape index: {}]
  %s5 = inlined_call_operand.vmem [shape: bf16[16,72], index: 5, kind: input, shape index: {}]
  %s6 = inlined_call_operand.vmem [shape: f32[16,1], index: 6, kind: input, shape index: {}]
  %s7 = inlined_call_operand.vmem [shape: f32[2,16,256], index: 7, kind: output, shape index: {}]
  %s8 = sld [smem:[#allocation0]]
  $region61: #{masked_convolution_forward.1} parent=0
    _
  %s10 = ssub.s32 1, %s8
  %s11 = scalar_select 0, %s10, %s8
  loop: start=0, step=1, limit=4
  $region2: #{masked_convolution_forward.1} parent=0 // loop_pre_header
    _
  $region3: #{masked_convolution_forward.1} parent=0 // loop_header
    %s13 = sphi 0, %s17
    %p14 = scmp.ge.s32.totalorder %s13, 4
    %s23 = sphi 0, %s25
    %s26 = sphi 0, %s23
    %s27 = sphi 0, %s26
    %s43 = sphi 0, %s27
    %s49 = sphi 0, %s51
    %s52 = sphi 0, %s49
    %s53 = sphi 0, %s52
    %s69 = sphi 0, %s53
    %s75 = sphi 0, %s77
    %s78 = sphi 0, %s75
    %s79 = sphi 0, %s78
    %s95 = sphi 0, %s79
    %s99 = sphi 0, %s99
    %s101 = sphi 0, %s99
    %s102 = sphi 0, %s101
    %s116 = sphi 0, %s102
    %s120 = sphi 0, %s120
    %s122 = sphi 0, %s120
    %s123 = sphi 0, %s122
    %s137 = sphi 0, %s123
    %s141 = sphi 0, %s141
    %s143 = sphi 0, %s141
    %s144 = sphi 0, %s143
    %s158 = sphi 0, %s144
    %s162 = sphi 0, %s162
    %s164 = sphi 0, %s162
    %s165 = sphi 0, %s164
    %s179 = sphi 0, %s165
    %s185 = sphi 0, %s187
    %s188 = sphi 0, %s185
    %s189 = sphi 0, %s188
    %s205 = sphi 0, %s189
  $region4: #{masked_convolution_forward.1} parent=0 // loop_header_branch
    %16 = sbr.rel (%p14) target = $region8
  $region5: #{masked_convolution_forward.1} parent=0 // loop_body
    %s18 = ssub.s32 %s13, 1
    %s19 = ssub.s32 %s13, 2
    %s20 = sadd.s32 %s13, 1
    %s21 = ssub.s32 %s13, %s20
    %p22 = scmp.eq.s32.totalorder %s21, 0
    %s24 = sadd.s32 %s23, 1
    %s25 = scalar_select %p22, %s23, %s24
    %p28 = pneg %p22
    %p29 = scmp.eq.s32.totalorder %s13, 1
    %p30 = por %p28, %p29
    %p31 = scmp.ne.s32.totalorder %s23, %s26
    %p32 = scmp.eq.s32.totalorder %s13, 0
    %p33 = por %p31, %p32
    %p34 = scmp.ne.s32.totalorder %s23, %s26
    %p35 = scmp.eq.s32.totalorder %s18, 1
    %p36 = por %p34, %p35
    %p37 = scmp.ne.s32.totalorder %s26, %s27
    %p38 = scmp.eq.s32.totalorder %s18, 0
    %p39 = por %p37, %p38
    %p40 = scmp.ne.s32.totalorder %s26, %s27
    %p41 = scmp.eq.s32.totalorder %s19, 1
    %p42 = por %p40, %p41
    %p44 = scmp.ne.s32.totalorder %s27, %s43
    %p45 = scmp.eq.s32.totalorder %s19, 0
    %p46 = por %p44, %p45
    %s47 = ssub.s32 %s13, %s20
    %p48 = scmp.eq.s32.totalorder %s47, 0
    %s50 = sadd.s32 %s49, 1
    %s51 = scalar_select %p48, %s49, %s50
    %p54 = pneg %p48
    %p55 = scmp.eq.s32.totalorder %s13, 1
    %p56 = por %p54, %p55
    %p57 = scmp.ne.s32.totalorder %s49, %s52
    %p58 = scmp.eq.s32.totalorder %s13, 0
    %p59 = por %p57, %p58
    %p60 = scmp.ne.s32.totalorder %s49, %s52
    %p61 = scmp.eq.s32.totalorder %s18, 1
    %p62 = por %p60, %p61
    %p63 = scmp.ne.s32.totalorder %s52, %s53
    %p64 = scmp.eq.s32.totalorder %s18, 0
    %p65 = por %p63, %p64
    %p66 = scmp.ne.s32.totalorder %s52, %s53
    %p67 = scmp.eq.s32.totalorder %s19, 1
    %p68 = por %p66, %p67
    %p70 = scmp.ne.s32.totalorder %s53, %s69
    %p71 = scmp.eq.s32.totalorder %s19, 0
    %p72 = por %p70, %p71
    %s73 = ssub.s32 %s13, %s20
    %p74 = scmp.eq.s32.totalorder %s73, 0
    %s76 = sadd.s32 %s75, 1
    %s77 = scalar_select %p74, %s75, %s76
    %p80 = pneg %p74
    %p81 = scmp.eq.s32.totalorder %s13, 1
    %p82 = por %p80, %p81
    %p83 = scmp.ne.s32.totalorder %s75, %s78
    %p84 = scmp.eq.s32.totalorder %s13, 0
    %p85 = por %p83, %p84
    %p86 = scmp.ne.s32.totalorder %s75, %s78
    %p87 = scmp.eq.s32.totalorder %s18, 1
    %p88 = por %p86, %p87
    %p89 = scmp.ne.s32.totalorder %s78, %s79
    %p90 = scmp.eq.s32.totalorder %s18, 0
    %p91 = por %p89, %p90
    %p92 = scmp.ne.s32.totalorder %s78, %s79
    %p93 = scmp.eq.s32.totalorder %s19, 1
    %p94 = por %p92, %p93
    %p96 = scmp.ne.s32.totalorder %s79, %s95
    %p97 = scmp.eq.s32.totalorder %s19, 0
    %p98 = por %p96, %p97
    %s100 = sadd.s32 %s99, 1
    %p103 = scmp.eq.s32.totalorder %s13, 1
    %p104 = scmp.ne.s32.totalorder %s99, %s101
    %p105 = scmp.eq.s32.totalorder %s13, 0
    %p106 = por %p104, %p105
    %p107 = scmp.ne.s32.totalorder %s99, %s101
    %p108 = scmp.eq.s32.totalorder %s18, 1
    %p109 = por %p107, %p108
    %p110 = scmp.ne.s32.totalorder %s101, %s102
    %p111 = scmp.eq.s32.totalorder %s18, 0
    %p112 = por %p110, %p111
    %p113 = scmp.ne.s32.totalorder %s101, %s102
    %p114 = scmp.eq.s32.totalorder %s19, 1
    %p115 = por %p113, %p114
    %p117 = scmp.ne.s32.totalorder %s102, %s116
    %p118 = scmp.eq.s32.totalorder %s19, 0
    %p119 = por %p117, %p118
    %s121 = sadd.s32 %s120, 1
    %p124 = scmp.eq.s32.totalorder %s13, 1
    %p125 = scmp.ne.s32.totalorder %s120, %s122
    %p126 = scmp.eq.s32.totalorder %s13, 0
    %p127 = por %p125, %p126
    %p128 = scmp.ne.s32.totalorder %s120, %s122
    %p129 = scmp.eq.s32.totalorder %s18, 1
    %p130 = por %p128, %p129
    %p131 = scmp.ne.s32.totalorder %s122, %s123
    %p132 = scmp.eq.s32.totalorder %s18, 0
    %p133 = por %p131, %p132
    %p134 = scmp.ne.s32.totalorder %s122, %s123
    %p135 = scmp.eq.s32.totalorder %s19, 1
    %p136 = por %p134, %p135
    %p138 = scmp.ne.s32.totalorder %s123, %s137
    %p139 = scmp.eq.s32.totalorder %s19, 0
    %p140 = por %p138, %p139
    %s142 = sadd.s32 %s141, 1
    %p145 = scmp.eq.s32.totalorder %s13, 1
    %p146 = scmp.ne.s32.totalorder %s141, %s143
    %p147 = scmp.eq.s32.totalorder %s13, 0
    %p148 = por %p146, %p147
    %p149 = scmp.ne.s32.totalorder %s141, %s143
    %p150 = scmp.eq.s32.totalorder %s18, 1
    %p151 = por %p149, %p150
    %p152 = scmp.ne.s32.totalorder %s143, %s144
    %p153 = scmp.eq.s32.totalorder %s18, 0
    %p154 = por %p152, %p153
    %p155 = scmp.ne.s32.totalorder %s143, %s144
    %p156 = scmp.eq.s32.totalorder %s19, 1
    %p157 = por %p155, %p156
    %p159 = scmp.ne.s32.totalorder %s144, %s158
    %p160 = scmp.eq.s32.totalorder %s19, 0
    %p161 = por %p159, %p160
    %s163 = sadd.s32 %s162, 1
    %p166 = scmp.eq.s32.totalorder %s13, 1
    %p167 = scmp.ne.s32.totalorder %s162, %s164
    %p168 = scmp.eq.s32.totalorder %s13, 0
    %p169 = por %p167, %p168
    %p170 = scmp.ne.s32.totalorder %s162, %s164
    %p171 = scmp.eq.s32.totalorder %s18, 1
    %p172 = por %p170, %p171
    %p173 = scmp.ne.s32.totalorder %s164, %s165
    %p174 = scmp.eq.s32.totalorder %s18, 0
    %p175 = por %p173, %p174
    %p176 = scmp.ne.s32.totalorder %s164, %s165
    %p177 = scmp.eq.s32.totalorder %s19, 1
    %p178 = por %p176, %p177
    %p180 = scmp.ne.s32.totalorder %s165, %s179
    %p181 = scmp.eq.s32.totalorder %s19, 0
    %p182 = por %p180, %p181
    %s183 = ssub.s32 %s13, %s20
    %p184 = scmp.eq.s32.totalorder %s183, 0
    %s186 = sadd.s32 %s185, 1
    %s187 = scalar_select %p184, %s185, %s186
    %p190 = pneg %p184
    %p191 = scmp.eq.s32.totalorder %s13, 1
    %p192 = por %p190, %p191
    %p193 = scmp.ne.s32.totalorder %s185, %s188
    %p194 = scmp.eq.s32.totalorder %s13, 0
    %p195 = por %p193, %p194
    %p196 = scmp.ne.s32.totalorder %s185, %s188
    %p197 = scmp.eq.s32.totalorder %s18, 1
    %p198 = por %p196, %p197
    %p199 = scmp.ne.s32.totalorder %s188, %s189
    %p200 = scmp.eq.s32.totalorder %s18, 0
    %p201 = por %p199, %p200
    %p202 = scmp.ne.s32.totalorder %s188, %s189
    %p203 = scmp.eq.s32.totalorder %s19, 1
    %p204 = por %p202, %p203
    %p206 = scmp.ne.s32.totalorder %s189, %s205
    %p207 = scmp.eq.s32.totalorder %s19, 0
    %p208 = por %p206, %p207
    %p209 = scmp.le.s32.totalorder 1, %s13
    %p210 = scmp.lt.s32.totalorder %s13, 3
    %p211 = pnand %p209, %p210
    %p212 = pneg %p211
    // Predicated region
    $region9: #{masked_convolution_forward.1} parent=5 // pred_check
      _
    $region10: #{masked_convolution_forward.1} parent=5 // pred_check_branch
      %214 = sbr.rel (%p211) target = $region12
    $region11: #{masked_convolution_forward.1} parent=5 // pred_region
      %s215 = ssub.s32 %s13, 1
      // Predicated region
      $region13: #{masked_convolution_forward.1} parent=11 // pred_check
        %p216 = pneg %p112
      $region14: #{masked_convolution_forward.1} parent=11 // pred_check_branch
        %218 = sbr.rel (%p216) target = $region16
      $region15: #{masked_convolution_forward.1} parent=11 // pred_region
        _
      $region16: #{masked_convolution_forward.1} parent=11 // pred_fallthru
        _
      // Predicated region
      $region17: #{masked_convolution_forward.1} parent=11 // pred_check
        %p219 = pneg %p133
      $region18: #{masked_convolution_forward.1} parent=11 // pred_check_branch
        %221 = sbr.rel (%p219) target = $region20
      $region19: #{masked_convolution_forward.1} parent=11 // pred_region
        _
      $region20: #{masked_convolution_forward.1} parent=11 // pred_fallthru
        _
      // Predicated region
      $region21: #{masked_convolution_forward.1} parent=11 // pred_check
        %p222 = pneg %p154
      $region22: #{masked_convolution_forward.1} parent=11 // pred_check_branch
        %224 = sbr.rel (%p222) target = $region24
      $region23: #{masked_convolution_forward.1} parent=11 // pred_region
        _
      $region24: #{masked_convolution_forward.1} parent=11 // pred_fallthru
        _
      // Predicated region
      $region25: #{masked_convolution_forward.1} parent=11 // pred_check
        %p225 = pneg %p175
      $region26: #{masked_convolution_forward.1} parent=11 // pred_check_branch
        %227 = sbr.rel (%p225) target = $region28
      $region27: #{masked_convolution_forward.1} parent=11 // pred_region
        _
      $region28: #{masked_convolution_forward.1} parent=11 // pred_fallthru
        _
    $region12: #{masked_convolution_forward.1} parent=5 // pred_fallthru
      _
    %p228 = scmp.lt.s32.totalorder %s13, 2
    // Predicated region
    $region29: #{masked_convolution_forward.1} parent=5 // pred_check
      %p229 = pneg %p228
    $region30: #{masked_convolution_forward.1} parent=5 // pred_check_branch
      %231 = sbr.rel (%p229) target = $region32
    $region31: #{masked_convolution_forward.1} parent=5 // pred_region
      // Predicated region
      $region33: #{masked_convolution_forward.1} parent=31 // pred_check
        %p232 = pneg %p33
      $region34: #{masked_convolution_forward.1} parent=31 // pred_check_branch
        %234 = sbr.rel (%p232) target = $region36
      $region35: #{masked_convolution_forward.1} parent=31 // pred_region
        %p235 = scmp.lt.s32.totalorder %s13, 1
        %s236 = scalar_select %p235, %s13, 1
        %s237 = smul.addr %s236, 3
        %s238 = smul.addr %s237, 4
        %s239 = scalar_lea.vmem %s0, %s238
      $region36: #{masked_convolution_forward.1} parent=31 // pred_fallthru
        _
      // Predicated region
      $region37: #{masked_convolution_forward.1} parent=31 // pred_check
        %p240 = pneg %p59
      $region38: #{masked_convolution_forward.1} parent=31 // pred_check_branch
        %242 = sbr.rel (%p240) target = $region40
      $region39: #{masked_convolution_forward.1} parent=31 // pred_region
        %p243 = scmp.lt.s32.totalorder %s13, 1
        %s244 = scalar_select %p243, %s13, 1
        %s245 = smul.addr %s244, 2
        %s246 = scalar_lea.vmem %s1, %s245
      $region40: #{masked_convolution_forward.1} parent=31 // pred_fallthru
        _
      // Predicated region
      $region41: #{masked_convolution_forward.1} parent=31 // pred_check
        %p247 = pneg %p85
      $region42: #{masked_convolution_forward.1} parent=31 // pred_check_branch
        %249 = sbr.rel (%p247) target = $region44
      $region43: #{masked_convolution_forward.1} parent=31 // pred_region
        %p250 = scmp.lt.s32.totalorder %s13, 1
        %s251 = scalar_select %p250, %s13, 1
        %s252 = smul.addr %s251, 2
        %s253 = scalar_lea.vmem %s2, %s252
      $region44: #{masked_convolution_forward.1} parent=31 // pred_fallthru
        _
    $region32: #{masked_convolution_forward.1} parent=5 // pred_fallthru
      _
    %p254 = scmp.le.s32.totalorder 1, %s13
    %p255 = scmp.lt.s32.totalorder %s13, 3
    %p256 = pnand %p254, %p255
    %p257 = pneg %p256
    // Predicated region
    $region45: #{masked_convolution_forward.1} parent=5 // pred_check
      _
    $region46: #{masked_convolution_forward.1} parent=5 // pred_check_branch
      %259 = sbr.rel (%p256) target = $region48
    $region47: #{masked_convolution_forward.1} parent=5 // pred_region
      %s260 = ssub.s32 %s13, 1
      %p261 = scmp.lt.s32.totalorder %s18, 1
      %s262 = scalar_select %p261, %s18, 1
      %s263 = smul.addr %s262, 3
      %s264 = smul.addr %s263, 4
      %s265 = scalar_lea.vmem %s0, %s264
      %p266 = pneg %p39
      %p267 = pneg %p36
      %p268 = scmp.lt.s32.totalorder %s18, 1
      %s269 = scalar_select %p268, %s18, 1
      %s270 = smul.addr %s269, 2
      %s271 = scalar_lea.vmem %s1, %s270
      %p272 = pneg %p65
      %p273 = pneg %p62
      %p274 = scmp.lt.s32.totalorder %s18, 1
      %s275 = scalar_select %p274, %s18, 1
      %s276 = smul.addr %s275, 2
      %s277 = scalar_lea.vmem %s2, %s276
      %p278 = pneg %p91
      %p279 = pneg %p88
      %p280 = pneg %p112
      %p281 = pneg %p109
      %p282 = pneg %p133
      %p283 = pneg %p130
      %p284 = pneg %p154
      %p285 = pneg %p151
      %p286 = pneg %p175
      %p287 = pneg %p172
      %p288 = pneg %p201
      %p289 = pneg %p198
      %p290 = scmp.lt.s32.totalorder %s18, 1
      %s291 = scalar_select %p290, %s18, 1
      %s292 = smul.addr %s291, 4
      %s293 = smul.addr %s292, 8
      %s294 = scalar_lea.vmem %s7, %s293
      %p295 = scmp.lt.s32.totalorder %s18, 1
      %s296 = scalar_select %p295, %s18, 1
      %s297 = smul.addr %s296, 3
      %s298 = smul.addr %s297, 4
      %s299 = scalar_lea.vmem %s0, %s298
      %p300 = scmp.lt.s32.totalorder %s18, 1
      %s301 = scalar_select %p300, %s18, 1
      %s302 = smul.addr %s301, 2
      %s303 = scalar_lea.vmem %s1, %s302
      %p304 = scmp.lt.s32.totalorder %s18, 1
      %s305 = scalar_select %p304, %s18, 1
      %s306 = smul.addr %s305, 2
      %s307 = scalar_lea.vmem %s2, %s306
      %p308 = scmp.lt.s32.totalorder %s18, 1
      %s309 = scalar_select %p308, %s18, 1
      %s310 = smul.addr %s309, 4
      %s311 = smul.addr %s310, 8
      %s312 = scalar_lea.vmem %s7, %s311
      %v314 = vld [vmem:[%s299] sm:$0xff]
      %v315 = vld [vmem:[%s299 + $0x8] sm:$0xf]
      %317 = vst [vmem:[#allocation1] ss:$2 sm:$0xff] %v314
      %v318 = vld.sshfl [vmem:[#allocation1] sm:$0xff pattern:$0x75316420]
      %v319 = vld.sshfl [vmem:[#allocation1 + $0x8] sm:$0xff pattern:$0x75316420]
      %s323 = scalar_lea.vmem [#allocation1], 1
      %324 = vst [vmem:[%s323] ss:$2 sm:$0xff] %v314
      %s325 = scalar_lea.vmem [#allocation1], 17
      %326 = vst [vmem:[%s325] ss:$2 sm:$0xff] %v315
      %v327 = vld.sshfl [vmem:[#allocation1] sm:$0xff pattern:$0x75316420]
      %v328 = vld.sshfl [vmem:[#allocation1 + $0x8] sm:$0xff pattern:$0x75316420]
      %v329 = vld.sshfl [vmem:[#allocation1 + $0x10] sm:$0xff pattern:$0x75316420]
      %330 = vrot.lane.b32.xlu0 %v327, 127
      %v331 = vpop.permute.xlu0 %330
      %332 = vrot.lane.b32.xlu0 %v328, 127
      %v333 = vpop.permute.xlu0 %332
      %334 = vrot.lane.b32.xlu0 %v329, 127
      %v335 = vpop.permute.xlu0 %334
      %vm336 = vcmask 1039360
      %v337 = vsel %vm336, %v331, %v333
      %v338 = vsel %vm336, %v333, %v335
      %341 = vst [vmem:[#allocation1] ss:$2 sm:$0xff] %v314
      %s342 = scalar_lea.vmem [#allocation1], 16
      %343 = vst [vmem:[%s342] ss:$2 sm:$0xff] %v315
      %v344 = vld.sshfl [vmem:[#allocation1] sm:$0xff pattern:$0x75316420]
      %v345 = vld.sshfl [vmem:[#allocation1 + $0x8] sm:$0xff pattern:$0x75316420]
      %v346 = vld.sshfl [vmem:[#allocation1 + $0x10] sm:$0xff pattern:$0x75316420]
      %347 = vrot.lane.b32.xlu0 %v344, 126
      %v348 = vpop.permute.xlu0 %347
      %349 = vrot.lane.b32.xlu0 %v345, 126
      %v350 = vpop.permute.xlu0 %349
      %351 = vrot.lane.b32.xlu0 %v346, 126
      %v352 = vpop.permute.xlu0 %351
      %vm353 = vcmask 1031168
      %v354 = vsel %vm353, %v348, %v350
      %v355 = vsel %vm353, %v350, %v352
      %s358 = scalar_lea.vmem [#allocation1], 1
      %359 = vst [vmem:[%s358] ss:$2 sm:$0xff] %v314
      %s360 = scalar_lea.vmem [#allocation1], 17
      %361 = vst [vmem:[%s360] ss:$2 sm:$0xff] %v315
      %v362 = vld.sshfl [vmem:[#allocation1] sm:$0xff pattern:$0x75316420]
      %v363 = vld.sshfl [vmem:[#allocation1 + $0x8] sm:$0xff pattern:$0x75316420]
      %v364 = vld.sshfl [vmem:[#allocation1 + $0x10] sm:$0xff pattern:$0x75316420]
      %365 = vrot.lane.b32.xlu0 %v362, 112
      %v366 = vpop.permute.xlu0 %365
      %367 = vrot.lane.b32.xlu0 %v363, 112
      %v368 = vpop.permute.xlu0 %367
      %369 = vrot.lane.b32.xlu0 %v364, 112
      %v370 = vpop.permute.xlu0 %369
      %vm371 = vcmask 916480
      %v372 = vsel %vm371, %v366, %v368
      %v373 = vsel %vm371, %v368, %v370
      %376 = vst [vmem:[#allocation1] ss:$2 sm:$0xff] %v314
      %s377 = scalar_lea.vmem [#allocation1], 16
      %378 = vst [vmem:[%s377] ss:$2 sm:$0xff] %v315
      %v379 = vld.sshfl [vmem:[#allocation1] sm:$0xff pattern:$0x75316420]
      %v380 = vld.sshfl [vmem:[#allocation1 + $0x8] sm:$0xff pattern:$0x75316420]
      %v381 = vld.sshfl [vmem:[#allocation1 + $0x10] sm:$0xff pattern:$0x75316420]
      %382 = vrot.lane.b32.xlu0 %v379, 111
      %v383 = vpop.permute.xlu0 %382
      %384 = vrot.lane.b32.xlu0 %v380, 111
      %v385 = vpop.permute.xlu0 %384
      %386 = vrot.lane.b32.xlu0 %v381, 111
      %v387 = vpop.permute.xlu0 %386
      %vm388 = vcmask 908288
      %v389 = vsel %vm388, %v383, %v385
      %v390 = vsel %vm388, %v385, %v387
      %s393 = scalar_lea.vmem [#allocation1], 1
      %394 = vst [vmem:[%s393] ss:$2 sm:$0xff] %v314
      %s395 = scalar_lea.vmem [#allocation1], 17
      %396 = vst [vmem:[%s395] ss:$2 sm:$0xff] %v315
      %v397 = vld.sshfl [vmem:[#allocation1] sm:$0xff pattern:$0x75316420]
      %v398 = vld.sshfl [vmem:[#allocation1 + $0x8] sm:$0xff pattern:$0x75316420]
      %v399 = vld.sshfl [vmem:[#allocation1 + $0x10] sm:$0xff pattern:$0x75316420]
      %400 = vrot.lane.b32.xlu0 %v397, 110
      %v401 = vpop.permute.xlu0 %400
      %402 = vrot.lane.b32.xlu0 %v398, 110
      %v403 = vpop.permute.xlu0 %402
      %404 = vrot.lane.b32.xlu0 %v399, 110
      %v405 = vpop.permute.xlu0 %404
      %vm406 = vcmask 900096
      %v407 = vsel %vm406, %v401, %v403
      %v408 = vsel %vm406, %v403, %v405
      %411 = vst [vmem:[#allocation1] ss:$2 sm:$0xff] %v314
      %s412 = scalar_lea.vmem [#allocation1], 16
      %413 = vst [vmem:[%s412] ss:$2 sm:$0xff] %v315
      %v414 = vld.sshfl [vmem:[#allocation1] sm:$0xff pattern:$0x75316420]
      %v415 = vld.sshfl [vmem:[#allocation1 + $0x8] sm:$0xff pattern:$0x75316420]
      %v416 = vld.sshfl [vmem:[#allocation1 + $0x10] sm:$0xff pattern:$0x75316420]
      %417 = vrot.lane.b32.xlu0 %v414, 96
      %v418 = vpop.permute.xlu0 %417
      %419 = vrot.lane.b32.xlu0 %v415, 96
      %v420 = vpop.permute.xlu0 %419
      %421 = vrot.lane.b32.xlu0 %v416, 96
      %v422 = vpop.permute.xlu0 %421
      %vm423 = vcmask 785408
      %v424 = vsel %vm423, %v418, %v420
      %v425 = vsel %vm423, %v420, %v422
      %s428 = scalar_lea.vmem [#allocation1], 1
      %429 = vst [vmem:[%s428] ss:$2 sm:$0xff] %v314
      %s430 = scalar_lea.vmem [#allocation1], 17
      %431 = vst [vmem:[%s430] ss:$2 sm:$0xff] %v315
      %v432 = vld.sshfl [vmem:[#allocation1] sm:$0xff pattern:$0x75316420]
      %v433 = vld.sshfl [vmem:[#allocation1 + $0x8] sm:$0xff pattern:$0x75316420]
      %v434 = vld.sshfl [vmem:[#allocation1 + $0x10] sm:$0xff pattern:$0x75316420]
      %435 = vrot.lane.b32.xlu0 %v432, 95
      %v436 = vpop.permute.xlu0 %435
      %437 = vrot.lane.b32.xlu0 %v433, 95
      %v438 = vpop.permute.xlu0 %437
      %439 = vrot.lane.b32.xlu0 %v434, 95
      %v440 = vpop.permute.xlu0 %439
      %vm441 = vcmask 777216
      %v442 = vsel %vm441, %v436, %v438
      %v443 = vsel %vm441, %v438, %v440
      %446 = vst [vmem:[#allocation1] ss:$2 sm:$0xff] %v314
      %s447 = scalar_lea.vmem [#allocation1], 16
      %448 = vst [vmem:[%s447] ss:$2 sm:$0xff] %v315
      %v449 = vld.sshfl [vmem:[#allocation1] sm:$0xff pattern:$0x75316420]
      %v450 = vld.sshfl [vmem:[#allocation1 + $0x8] sm:$0xff pattern:$0x75316420]
      %v451 = vld.sshfl [vmem:[#allocation1 + $0x10] sm:$0xff pattern:$0x75316420]
      %452 = vrot.lane.b32.xlu0 %v449, 94
      %v453 = vpop.permute.xlu0 %452
      %454 = vrot.lane.b32.xlu0 %v450, 94
      %v455 = vpop.permute.xlu0 %454
      %456 = vrot.lane.b32.xlu0 %v451, 94
      %v457 = vpop.permute.xlu0 %456
      %vm458 = vcmask 769024
      %v459 = vsel %vm458, %v453, %v455
      %v460 = vsel %vm458, %v455, %v457
      %vm463 = vcmask 1043456
      %v464 = vsel %vm463, %v318, %v337
      %v465 = vsel %vm463, %v319, %v338
      %v466 = vsel %vm463, %v354, %v372
      %v467 = vsel %vm463, %v355, %v373
      %v468 = vsel %vm463, %v389, %v407
      %v469 = vsel %vm463, %v390, %v408
      %v470 = vsel %vm463, %v424, %v442
      %v471 = vsel %vm463, %v425, %v443
      %v472 = vld [vmem:[%s3] sm:$0xf]
      %v473 = vpack.c.bf16 %v466, %v464
      %v474 = vpack.c.bf16 %v467, %v465
      %v475 = vpack.c.bf16 %v470, %v468
      %v476 = vpack.c.bf16 %v471, %v469
      %v477 = vpack.c.bf16 %v459, %v459
      %v478 = vpack.c.bf16 %v460, %v460
      %v479 = vld [vmem:[%s4] sm:$0xff]
      %481 = vset.pattern.permute.xlu0 0
      %482 = vperm.xlu0 %481, %v479
      %v483 = vpop.permute.xlu0 %482
      %vm485 = vcmask 293888
      %v487 = vsel %vm485, %v472, 0
      %vm489 = vcmask 1041408
      %v491 = vsel %vm489, %v477, 0
      %v494 = vsel %vm489, %v478, 0
      %496 = vmatpush.bf16.msra.mxu0 0
      %497 = vmatpush.bf16.msra.mxu0 0
      %498 = vmatpush.bf16.msra.mxu0 0
      %499 = vmatpush.bf16.msra.mxu0 0
      %500 = vmatpush.bf16.msra.mxu0 0
      %501 = vmatpush.bf16.msra.mxu0 %v491
      %502 = vmatpush.bf16.msra.mxu0 %v475
      %503 = vmatpush.bf16.msra.mxu0 %v473
      %504 = vmatmul.bf16.gmra.mxu0 %v487
      %v505 = vpop.f32.mrf.mxu0
      %v506 = vadd.f32 %v483, %v505
      %v507 = vpop.f32.mrf.mxu0
      %508 = vdwg.mxu0
      %509 = vmatpush.bf16.msra.mxu0 0
      %510 = vmatpush.bf16.msra.mxu0 0
      %511 = vmatpush.bf16.msra.mxu0 0
      %512 = vmatpush.bf16.msra.mxu0 0
      %513 = vmatpush.bf16.msra.mxu0 0
      %514 = vmatpush.bf16.msra.mxu0 %v494
      %515 = vmatpush.bf16.msra.mxu0 %v476
      %516 = vmatpush.bf16.msra.mxu0 %v474
      %517 = vmatmul.bf16.gmra.mxu0 %v487
      %v518 = vpop.f32.mrf.mxu0
      %v519 = vadd.f32 %v483, %v518
      %v520 = vpop.f32.mrf.mxu0
      %521 = vdwg.mxu0
      %v522 = vmax.f32 %v506, 0.0
      %v523 = vmax.f32 %v519, 0.0
      %v524 = vld [vmem:[%s303] sm:$0x3]
      %v526 = vperm.slane %v524, 0
      %v527 = vperm.slane %v524, 1
      %v530 = vmul.f32 %v522, %v526
      %v531 = vmul.f32 %v523, %v527
      %534 = vrot.lane.b32.xlu0 %v530, 17
      %v535 = vpop.permute.xlu0 %534
      %536 = vrot.lane.b32.xlu0 %v531, 17
      %v537 = vpop.permute.xlu0 %536
      %vm538 = vcmask 138240
      %v539 = vsel %vm538, %v535, %v537
      %v543 = vsel %vm538, 0.0, %v535
      %v544 = vsel %vm538, %v537, 0.0
      %547 = vrot.lane.b32.xlu0 %v543, 127
      %v548 = vpop.permute.xlu0 %547
      %549 = vrot.lane.b32.xlu0 %v539, 127
      %v550 = vpop.permute.xlu0 %549
      %551 = vrot.lane.b32.xlu0 %v544, 127
      %v552 = vpop.permute.xlu0 %551
      %v553 = vsel %vm336, %v548, %v550
      %v554 = vsel %vm336, %v550, %v552
      %557 = vrot.lane.b32.xlu0 %v543, 126
      %v558 = vpop.permute.xlu0 %557
      %559 = vrot.lane.b32.xlu0 %v539, 126
      %v560 = vpop.permute.xlu0 %559
      %561 = vrot.lane.b32.xlu0 %v544, 126
      %v562 = vpop.permute.xlu0 %561
      %v563 = vsel %vm353, %v558, %v560
      %v564 = vsel %vm353, %v560, %v562
      %567 = vrot.lane.b32.xlu0 %v543, 112
      %v568 = vpop.permute.xlu0 %567
      %569 = vrot.lane.b32.xlu0 %v539, 112
      %v570 = vpop.permute.xlu0 %569
      %571 = vrot.lane.b32.xlu0 %v544, 112
      %v572 = vpop.permute.xlu0 %571
      %v573 = vsel %vm371, %v568, %v570
      %v574 = vsel %vm371, %v570, %v572
      %577 = vrot.lane.b32.xlu0 %v543, 111
      %v578 = vpop.permute.xlu0 %577
      %579 = vrot.lane.b32.xlu0 %v539, 111
      %v580 = vpop.permute.xlu0 %579
      %581 = vrot.lane.b32.xlu0 %v544, 111
      %v582 = vpop.permute.xlu0 %581
      %v583 = vsel %vm388, %v578, %v580
      %v584 = vsel %vm388, %v580, %v582
      %587 = vrot.lane.b32.xlu0 %v543, 110
      %v588 = vpop.permute.xlu0 %587
      %589 = vrot.lane.b32.xlu0 %v539, 110
      %v590 = vpop.permute.xlu0 %589
      %591 = vrot.lane.b32.xlu0 %v544, 110
      %v592 = vpop.permute.xlu0 %591
      %v593 = vsel %vm406, %v588, %v590
      %v594 = vsel %vm406, %v590, %v592
      %597 = vrot.lane.b32.xlu0 %v543, 96
      %v598 = vpop.permute.xlu0 %597
      %599 = vrot.lane.b32.xlu0 %v539, 96
      %v600 = vpop.permute.xlu0 %599
      %601 = vrot.lane.b32.xlu0 %v544, 96
      %v602 = vpop.permute.xlu0 %601
      %v603 = vsel %vm423, %v598, %v600
      %v604 = vsel %vm423, %v600, %v602
      %607 = vrot.lane.b32.xlu0 %v543, 95
      %v608 = vpop.permute.xlu0 %607
      %609 = vrot.lane.b32.xlu0 %v539, 95
      %v610 = vpop.permute.xlu0 %609
      %611 = vrot.lane.b32.xlu0 %v544, 95
      %v612 = vpop.permute.xlu0 %611
      %v613 = vsel %vm441, %v608, %v610
      %v614 = vsel %vm441, %v610, %v612
      %617 = vrot.lane.b32.xlu0 %v543, 94
      %v618 = vpop.permute.xlu0 %617
      %619 = vrot.lane.b32.xlu0 %v539, 94
      %v620 = vpop.permute.xlu0 %619
      %621 = vrot.lane.b32.xlu0 %v544, 94
      %v622 = vpop.permute.xlu0 %621
      %v623 = vsel %vm458, %v618, %v620
      %v624 = vsel %vm458, %v620, %v622
      %v627 = vld [vmem:[%s5] sm:$0xf]
      %v628 = vld [vmem:[%s5 + $0x4] sm:$0xf]
      %v629 = vpack.c.bf16 %v553, %v543
      %v630 = vpack.c.bf16 %v554, %v539
      %v631 = vpack.c.bf16 %v573, %v563
      %v632 = vpack.c.bf16 %v574, %v564
      %v633 = vpack.c.bf16 %v593, %v583
      %v634 = vpack.c.bf16 %v594, %v584
      %v635 = vpack.c.bf16 %v613, %v603
      %v636 = vpack.c.bf16 %v614, %v604
      %v637 = vpack.c.bf16 %v623, %v623
      %v638 = vpack.c.bf16 %v624, %v624
      %v639 = vld [vmem:[%s6] sm:$0xff]
      %v640 = vld [vmem:[%s6 + $0x8] sm:$0xff]
      %642 = vset.pattern.permute.xlu0 0
      %643 = vperm.xlu0 %642, %v639
      %v644 = vpop.permute.xlu0 %643
      %647 = vset.pattern.permute.xlu0 0
      %648 = vperm.xlu0 %647, %v640
      %v649 = vpop.permute.xlu0 %648
      %v653 = vunpack.c.l.b16 %v627
      %v654 = vunpack.c.l.b16 %v628
      %v655 = vpack.c.b16 %v654, %v653
      %vm656 = vcmask 588800
      %v658 = vsel %vm656, %v655, 0
      %v661 = vsel %vm463, %v637, 0
      %v664 = vsel %vm463, %v638, 0
      %666 = vmatpush.bf16.msra.mxu0 0
      %667 = vmatpush.bf16.msra.mxu0 0
      %668 = vmatpush.bf16.msra.mxu0 0
      %669 = vmatpush.bf16.msra.mxu0 %v661
      %670 = vmatpush.bf16.msra.mxu0 %v635
      %671 = vmatpush.bf16.msra.mxu0 %v633
      %672 = vmatpush.bf16.msra.mxu0 %v631
      %673 = vmatpush.bf16.msra.mxu0 %v629
      %674 = vmatmul.bf16.gmra.mxu0 %v658
      %v675 = vpop.f32.mrf.mxu0
      %v676 = vadd.f32 %v644, %v675
      %v677 = vpop.f32.mrf.mxu0
      %v678 = vadd.f32 %v649, %v677
      %679 = vdwg.mxu0
      %680 = vmatpush.bf16.msra.mxu0 0
      %681 = vmatpush.bf16.msra.mxu0 0
      %682 = vmatpush.bf16.msra.mxu0 0
      %683 = vmatpush.bf16.msra.mxu0 %v664
      %684 = vmatpush.bf16.msra.mxu0 %v636
      %685 = vmatpush.bf16.msra.mxu0 %v634
      %686 = vmatpush.bf16.msra.mxu0 %v632
      %687 = vmatpush.bf16.msra.mxu0 %v630
      %688 = vmatmul.bf16.gmra.mxu0 %v658
      %v689 = vpop.f32.mrf.mxu0
      %v690 = vadd.f32 %v644, %v689
      %v691 = vpop.f32.mrf.mxu0
      %v692 = vadd.f32 %v649, %v691
      %693 = vdwg.mxu0
      %v694 = vmax.f32 %v676, 0.0
      %v695 = vmax.f32 %v690, 0.0
      %v696 = vmax.f32 %v678, 0.0
      %v697 = vmax.f32 %v692, 0.0
      %v698 = vld [vmem:[%s307] sm:$0x3]
      %v700 = vperm.slane %v698, 0
      %v701 = vperm.slane %v698, 1
      %v704 = vmul.f32 %v694, %v700
      %v705 = vmul.f32 %v695, %v701
      %v706 = vmul.f32 %v696, %v700
      %v707 = vmul.f32 %v697, %v701
      %708 = vst [vmem:[%s312] sm:$0xff] %v704
      %709 = vst [vmem:[%s312 + $0x8] sm:$0xff] %v705
      %710 = vst [vmem:[%s312 + $0x10] sm:$0xff] %v706
      %711 = vst [vmem:[%s312 + $0x18] sm:$0xff] %v707
      %p712 = scmp.lt.s32.totalorder %s18, 1
      %s713 = scalar_select %p712, %s18, 1
      %s714 = smul.addr %s713, 4
      %s715 = smul.addr %s714, 8
      %s716 = scalar_lea.vmem %s7, %s715
      // Predicated region
      $region49: #{masked_convolution_forward.1} parent=47 // pred_check
        %p717 = pneg %p198
      $region50: #{masked_convolution_forward.1} parent=47 // pred_check_branch
        %719 = sbr.rel (%p717) target = $region52
      $region51: #{masked_convolution_forward.1} parent=47 // pred_region
        _
      $region52: #{masked_convolution_forward.1} parent=47 // pred_fallthru
        _
    $region48: #{masked_convolution_forward.1} parent=5 // pred_fallthru
      _
    %p720 = scmp.le.s32.totalorder 2, %s13
    // Predicated region
    $region53: #{masked_convolution_forward.1} parent=5 // pred_check
      %p721 = pneg %p720
    $region54: #{masked_convolution_forward.1} parent=5 // pred_check_branch
      %723 = sbr.rel (%p721) target = $region56
    $region55: #{masked_convolution_forward.1} parent=5 // pred_region
      %s724 = ssub.s32 %s13, 2
      // Predicated region
      $region57: #{masked_convolution_forward.1} parent=55 // pred_check
        %p725 = pneg %p204
      $region58: #{masked_convolution_forward.1} parent=55 // pred_check_branch
        %727 = sbr.rel (%p725) target = $region60
      $region59: #{masked_convolution_forward.1} parent=55 // pred_region
        %p728 = scmp.lt.s32.totalorder %s19, 1
        %s729 = scalar_select %p728, %s19, 1
        %s730 = smul.addr %s729, 4
        %s731 = smul.addr %s730, 8
        %s732 = scalar_lea.vmem %s7, %s731
      $region60: #{masked_convolution_forward.1} parent=55 // pred_fallthru
        _
    $region56: #{masked_convolution_forward.1} parent=5 // pred_fallthru
      _
  $region6: #{masked_convolution_forward.1} parent=0 // loop_footer
    %s17 = sadd.s32 1, %s13
  $region7: #{masked_convolution_forward.1} parent=0 // loop_footer_branch
    %12 = sbr.rel target = $region3
  $region8: #{masked_convolution_forward.1} parent=0 // loop_exit
    _

</llo_original>
